<compile_context>
chip_gen: v5e
topology: v5e:2x2
jax: 0.10.0
libtpu: 0.0.40
codegen_flags: <defaults>
</compile_context>

<pallas_src>
import jax
import jax.numpy as jnp
from jax.experimental import pallas as pl
from jax.experimental.pallas import tpu as pltpu

_LANE = 128
_SUBLANE = 8


def _round_up(n, m):
    return ((n + m - 1) // m) * m


def _make_chunk_kernel(Ep, Hp, Bp, Tc, T, n_chunks):
    """Build the kernel for fixed (static) padded sizes / chunk length."""
    mask_needed = (n_chunks * Tc) != T   # only the last chunk has padded steps

    def kernel(x_ref, h0_ref, wxh_ref, wy_ref, bh_ref, by_ref,
               y_ref, h_out_ref, xh_ref, hid_ref):
        # x_ref   : (Tc*Bp, Ep)   this chunk's inputs, rows [t*Bp:(t+1)*Bp]
        # h0_ref  : (Bp, Hp)      initial hidden state (resident)
        # wxh_ref : (Ep+Hp, Hp)   fused [W_x^T ; W_h^T] (resident)
        # wy_ref  : (Hp, Ep)      W_y^T (resident)
        # bh_ref  : (1, Hp)       hidden bias
        # by_ref  : (1, Ep)       output bias
        # y_ref   : (Tc*Bp, Ep)   this chunk's outputs
        # h_out_ref: (Bp, Hp)     final hidden state (written on last chunk)
        # xh_ref  : (Bp, Ep+Hp)   persistent [x | h] scratch (carry lives here)
        # hid_ref : (Tc*Bp, Hp)   per-chunk hidden stash for the y projection
        c = pl.program_id(0)

        @pl.when(c == 0)
        def _():
            xh_ref[:, Ep:] = h0_ref[...].astype(xh_ref.dtype)

        w_xh = wxh_ref[...]                                   # hoisted loads
        b_h = jnp.broadcast_to(bh_ref[...], (Bp, Hp))         # hoisted bcast

        # Serial recurrence over the chunk (statically unrolled).
        for i in range(Tc):
            xh_ref[:, :Ep] = x_ref[i * Bp:(i + 1) * Bp, :]    # copy x_t only
            xh = xh_ref[...]                                   # (Bp, Ep+Hp)
            hidden = jnp.tanh(
                jnp.dot(xh, w_xh, preferred_element_type=jnp.float32) + b_h)
            if mask_needed:
                valid = (c * Tc + i) < T
                carry = jnp.where(valid, hidden,
                                  xh[:, Ep:].astype(jnp.float32))
            else:
                carry = hidden
            xh_ref[:, Ep:] = carry.astype(xh_ref.dtype)        # hidden carry
            hid_ref[i * Bp:(i + 1) * Bp, :] = hidden.astype(hid_ref.dtype)

        # Output projection for the whole chunk (off the critical path):
        # one (Tc*Bp, Hp) @ (Hp, Ep) matmul instead of Tc tiny ones.
        y = jnp.tanh(
            jnp.dot(hid_ref[...], wy_ref[...],
                    preferred_element_type=jnp.float32) + by_ref[...])
        y_ref[...] = y.astype(y_ref.dtype)

        @pl.when(c == n_chunks - 1)
        def _():
            h_out_ref[...] = xh_ref[:, Ep:].astype(h_out_ref.dtype)

    return kernel


def prepare_params(W_x, W_h, W_y, B_h, B_y, compute_dtype=jnp.float32):
    """One-time host-side layout: fuse + transpose + pad the weights.

    W_x: (H, E), W_h: (H, H), W_y: (E, H), B_h: (1, H, 1), B_y: (1, E, 1).
    compute_dtype: MXU operand dtype (bf16 recommended on v6e/v7x); f32
    accumulation and f32 tanh are kept either way.
    """
    H, E = W_x.shape
    Ep = _round_up(E, _LANE)
    Hp = _round_up(H, _LANE)

    W_xh = jnp.zeros((Ep + Hp, Hp), jnp.float32)
    W_xh = W_xh.at[:E, :H].set(W_x.T)              # x rows
    W_xh = W_xh.at[Ep:Ep + H, :H].set(W_h.T)       # h rows
    W_y_p = jnp.zeros((Hp, Ep), jnp.float32).at[:H, :E].set(W_y.T)

    b_h_p = jnp.zeros((1, Hp), jnp.float32).at[:, :H].set(B_h.reshape(1, H))
    b_y_p = jnp.zeros((1, Ep), jnp.float32).at[:, :E].set(B_y.reshape(1, E))

    cdt = jnp.dtype(compute_dtype)
    return (W_xh.astype(cdt), W_y_p.astype(cdt), b_h_p, b_y_p,
            (E, H, Ep, Hp, cdt))


def rnn_forward_seq(x_seq, h0, prepared, *, max_chunk=32):
    """Run the whole recurrence in one pallas_call.

    x_seq: (T, B, E, 1), h0: (B, H, 1)
    returns (y_seq: (T, B, E, 1), h_final: (B, H, 1)).
    """
    W_xh, W_y_p, b_h_p, b_y_p, (E, H, Ep, Hp, cdt) = prepared
    T, B = x_seq.shape[0], x_seq.shape[1]
    Bp = _round_up(B, _SUBLANE)

    Tc = min(T, max_chunk)               # timesteps per grid iteration
    n_chunks = pl.cdiv(T, Tc)
    Tp = n_chunks * Tc

    # Pad: time to Tp, batch to Bp (sublanes), emb to Ep (lanes); flatten
    # (time, batch) so x/y blocks are plain lane-dense 2-D tiles.
    x3 = jnp.pad(x_seq[..., 0], ((0, Tp - T), (0, Bp - B), (0, Ep - E)))
    x2 = x3.reshape(Tp * Bp, Ep).astype(cdt)
    h2 = jnp.pad(h0[..., 0], ((0, Bp - B), (0, Hp - H)))     # f32

    itemsize = cdt.itemsize
    flops = 2 * Tp * Bp * ((Ep + Hp) * Hp + Hp * Ep)
    transcendentals = Tp * Bp * (Hp + Ep)
    bytes_accessed = (itemsize * (x2.size + W_xh.size + W_y_p.size)
                      + 4 * (h2.size + b_h_p.size + b_y_p.size
                             + Tp * Bp * Ep + Bp * Hp))

    # VMEM footprint estimate (x2 for double buffering) -> explicit limit so
    # large E/H do not silently hit the 32 MiB scoped default (esp. v7x).
    vmem_need = (2 * itemsize * (Tc * Bp * Ep)                  # x blocks
                 + 2 * 4 * (Tc * Bp * Ep)                       # y blocks
                 + 2 * itemsize * ((Ep + Hp) * Hp + Hp * Ep)    # weights
                 + 2 * 4 * (2 * Bp * Hp + Hp + Ep)              # h0/h_out/biases
                 + itemsize * (Bp * (Ep + Hp) + Tc * Bp * Hp))  # scratch
    vmem_limit = int(min(128 * 1024 * 1024,
                         max(32 * 1024 * 1024, 2 * vmem_need)))

    kernel = _make_chunk_kernel(Ep, Hp, Bp, Tc, T, n_chunks)

    y2, h_p = pl.pallas_call(
        kernel,
        out_shape=(
            jax.ShapeDtypeStruct((Tp * Bp, Ep), jnp.float32),
            jax.ShapeDtypeStruct((Bp, Hp), jnp.float32),
        ),
        grid_spec=pltpu.PrefetchScalarGridSpec(
            num_scalar_prefetch=0,
            grid=(n_chunks,),
            in_specs=[
                pl.BlockSpec((Tc * Bp, Ep), lambda c: (c, 0)),     # x chunk
                pl.BlockSpec((Bp, Hp), lambda c: (0, 0)),          # h0
                pl.BlockSpec((Ep + Hp, Hp), lambda c: (0, 0)),     # W_xh
                pl.BlockSpec((Hp, Ep), lambda c: (0, 0)),          # W_y
                pl.BlockSpec((1, Hp), lambda c: (0, 0)),           # b_h
                pl.BlockSpec((1, Ep), lambda c: (0, 0)),           # b_y
            ],
            out_specs=[
                pl.BlockSpec((Tc * Bp, Ep), lambda c: (c, 0)),     # y chunk
                pl.BlockSpec((Bp, Hp), lambda c: (0, 0)),          # h final
            ],
            scratch_shapes=[
                pltpu.VMEM((Bp, Ep + Hp), cdt),      # persistent [x | h]
                pltpu.VMEM((Tc * Bp, Hp), cdt),      # per-chunk hidden stash
            ],
        ),
        compiler_params=pltpu.CompilerParams(
            dimension_semantics=("arbitrary",),      # recurrence is sequential
            vmem_limit_bytes=vmem_limit),
        cost_estimate=pl.CostEstimate(
            flops=flops, transcendentals=transcendentals,
            bytes_accessed=bytes_accessed),
        # h0 (padded copy, input index 1) is donated to h_final (output 1).
        input_output_aliases={1: 1},
    )(x2, h2, W_xh, W_y_p, b_h_p, b_y_p)

    y = y2.reshape(Tp, Bp, Ep)[:T, :B, :E, None]
    h_new = h_p[:B, :H, None]
    return y, h_new


def rnn_forward(x, h, W_x, W_h, W_y, B_h, B_y):
    """Single-step forward matching the PyTorch module API.

    x: (B, E, 1), h: (B, H, 1) -> (y: (B, E, 1), hidden: (B, H, 1)).
    """
    prepared = prepare_params(W_x, W_h, W_y, B_h, B_y)
    y_seq, h_new = rnn_forward_seq(x[None], h, prepared)
    return y_seq[0], h_new


def init_params(key, hidden_size, emb_size):
    """Deterministic xavier-normal-style init (std = sqrt(2/(fan_in+fan_out)))."""
    k1, k2, k3 = jax.random.split(key, 3)
    std_x = (2.0 / (emb_size + hidden_size)) ** 0.5
    std_h = (2.0 / (hidden_size + hidden_size)) ** 0.5
    std_y = (2.0 / (hidden_size + emb_size)) ** 0.5
    W_x = std_x * jax.random.normal(k1, (hidden_size, emb_size), jnp.float32)
    W_h = std_h * jax.random.normal(k2, (hidden_size, hidden_size), jnp.float32)
    W_y = std_y * jax.random.normal(k3, (emb_size, hidden_size), jnp.float32)
    B_h = jnp.zeros((1, hidden_size, 1), jnp.float32)
    B_y = jnp.zeros((1, emb_size, 1), jnp.float32)
    return W_x, W_h, W_y, B_h, B_y


def rnn_forward_ref(x, h, W_x, W_h, W_y, B_h, B_y):
    """Pure-JAX reference mirroring the PyTorch forward (broadcasted matmuls)."""
    wx = jnp.matmul(W_x[None], x)          # (B, H, 1)
    wh = jnp.matmul(W_h[None], h)          # (B, H, 1)
    hidden = jnp.tanh(wx + wh + B_h)       # (B, H, 1)
    y = jnp.matmul(W_y[None], hidden)      # (B, E, 1)
    y = jnp.tanh(y + B_y)
    return y, hidden


if __name__ == "__main__":
    hidden_size = 32
    emb_size = 16
    batch = 4
    seq_len = 8

    key = jax.random.PRNGKey(0)
    kp, kx = jax.random.split(key, 2)

    W_x, W_h, W_y, B_h, B_y = init_params(kp, hidden_size, emb_size)
    prepared = prepare_params(W_x, W_h, W_y, B_h, B_y)

    x_seq = jax.random.normal(kx, (seq_len, batch, emb_size, 1), jnp.float32)
    h0 = jnp.zeros((batch, hidden_size, 1), jnp.float32)   # get_initial_h

    # --- pure-JAX sequential reference ---
    h_ref = h0
    ys_ref = []
    for t in range(seq_len):
        y_t, h_ref = rnn_forward_ref(x_seq[t], h_ref, W_x, W_h, W_y, B_h, B_y)
        ys_ref.append(y_t)
    y_seq_ref = jnp.stack(ys_ref, axis=0)

    # --- single-step check (exact module semantics) ---
    y1, h1 = rnn_forward(x_seq[0], h0, W_x, W_h, W_y, B_h, B_y)
    jax.block_until_ready((y1, h1))
    y1_ref, h1_ref = rnn_forward_ref(x_seq[0], h0, W_x, W_h, W_y, B_h, B_y)
    assert y1.shape == (batch, emb_size, 1)
    assert h1.shape == (batch, hidden_size, 1)
    assert jnp.allclose(y1, y1_ref, atol=1e-5, rtol=1e-5)
    assert jnp.allclose(h1, h1_ref, atol=1e-5, rtol=1e-5)

    # --- whole-sequence fused kernel: single chunk (T == Tc) ---
    y_seq, h_last = rnn_forward_seq(x_seq, h0, prepared)
    jax.block_until_ready((y_seq, h_last))
    assert y_seq.shape == (seq_len, batch, emb_size, 1)
    assert h_last.shape == (batch, hidden_size, 1)
    assert jnp.allclose(y_seq, y_seq_ref, atol=1e-5, rtol=1e-5)
    assert jnp.allclose(h_last, h_ref, atol=1e-5, rtol=1e-5)

    # --- multi-chunk + time-padding path (T % Tc != 0 exercises the mask) ---
    y_seq_c, h_last_c = rnn_forward_seq(x_seq, h0, prepared, max_chunk=5)
    jax.block_until_ready((y_seq_c, h_last_c))
    assert jnp.allclose(y_seq_c, y_seq_ref, atol=1e-5, rtol=1e-5)
    assert jnp.allclose(h_last_c, h_ref, atol=1e-5, rtol=1e-5)

    # --- bf16 compute path (v6e/v7x MXU path) smoke test ---
    prepared_bf16 = prepare_params(W_x, W_h, W_y, B_h, B_y,
                                   compute_dtype=jnp.bfloat16)
    y_bf, h_bf = rnn_forward_seq(x_seq, h0, prepared_bf16)
    jax.block_until_ready((y_bf, h_bf))
    assert y_bf.shape == (seq_len, batch, emb_size, 1)
    assert bool(jnp.all(jnp.isfinite(y_bf))) and bool(jnp.all(jnp.isfinite(h_bf)))
    # TODO(synk): bf16 path intentionally not checked to 1e-5 (weights are
    # rounded); relax tolerances if bit-level comparison is ever needed.

    print("KERNEL_OK")
</pallas_src>

<mosaic_0001>
module attributes {stable_mosaic.version = 11 : i64} {
  func.func @kernel(%arg0: i32, %arg1: memref<8x128xf32, #tpu.memory_space<vmem>>, %arg2: memref<8x128xf32, #tpu.memory_space<vmem>>, %arg3: memref<256x128xf32, #tpu.memory_space<vmem>>, %arg4: memref<128x128xf32, #tpu.memory_space<vmem>>, %arg5: memref<1x128xf32, #tpu.memory_space<vmem>>, %arg6: memref<1x128xf32, #tpu.memory_space<vmem>>, %arg7: memref<8x128xf32, #tpu.memory_space<vmem>>, %arg8: memref<8x128xf32, #tpu.memory_space<vmem>>, %arg9: memref<8x256xf32, #tpu.memory_space<vmem>>, %arg10: memref<8x128xf32, #tpu.memory_space<vmem>>) attributes {dimension_semantics = [#tpu.dimension_semantics<arbitrary>], iteration_bounds = array<i64: 1>, scalar_prefetch = 0 : i64, scratch_operands = 2 : i64, tpu.core_type = #tpu.core_type<tc>, window_params = [{transform_indices = @transform_0, window_bounds = array<i64: 8, 128>}, {pipeline_mode = #tpu.pipeline_mode<synchronous>, transform_indices = @transform_1, window_bounds = array<i64: 8, 128>}, {pipeline_mode = #tpu.pipeline_mode<synchronous>, transform_indices = @transform_2, window_bounds = array<i64: 256, 128>}, {pipeline_mode = #tpu.pipeline_mode<synchronous>, transform_indices = @transform_3, window_bounds = array<i64: 128, 128>}, {pipeline_mode = #tpu.pipeline_mode<synchronous>, transform_indices = @transform_4, window_bounds = array<i64: 1, 128>}, {pipeline_mode = #tpu.pipeline_mode<synchronous>, transform_indices = @transform_5, window_bounds = array<i64: 1, 128>}, {transform_indices = @transform_6, window_bounds = array<i64: 8, 128>}, {pipeline_mode = #tpu.pipeline_mode<synchronous>, transform_indices = @transform_7, window_bounds = array<i64: 8, 128>}]} {
    %c0_i32 = arith.constant 0 : i32
    %0 = arith.cmpi eq, %arg0, %c0_i32 : i32
    %1 = arith.extui %0 : i1 to i32
    %c0_i32_0 = arith.constant 0 : i32
    %2 = arith.cmpi ne, %1, %c0_i32_0 : i32
    scf.if %2 {
      %c0_24 = arith.constant 0 : index
      %c0_25 = arith.constant 0 : index
      %26 = vector.load %arg2[%c0_24, %c0_25] : memref<8x128xf32, #tpu.memory_space<vmem>>, vector<8x128xf32>
      %c0_26 = arith.constant 0 : index
      %c128_27 = arith.constant 128 : index
      %27 = vector.load %arg9[%c0_26, %c128_27] : memref<8x256xf32, #tpu.memory_space<vmem>>, vector<8x128xf32>
      tpu.vector_store %arg9[%c0_26, %c128_27], %26 {strides = array<i32>} : memref<8x256xf32, #tpu.memory_space<vmem>>, vector<8x128xf32>,
    } else {
    }
    %c0 = arith.constant 0 : index
    %c0_1 = arith.constant 0 : index
    %3 = vector.load %arg3[%c0, %c0_1] : memref<256x128xf32, #tpu.memory_space<vmem>>, vector<256x128xf32>
    %c0_2 = arith.constant 0 : index
    %c0_3 = arith.constant 0 : index
    %4 = vector.load %arg5[%c0_2, %c0_3] : memref<1x128xf32, #tpu.memory_space<vmem>>, vector<1x128xf32>
    %5 = vector.shape_cast %4 : vector<1x128xf32> to vector<1x128xf32>
    %6 = vector.broadcast %5 : vector<1x128xf32> to vector<8x128xf32>
    %c0_4 = arith.constant 0 : index
    %c0_5 = arith.constant 0 : index
    %7 = vector.load %arg1[%c0_4, %c0_5] : memref<8x128xf32, #tpu.memory_space<vmem>>, vector<8x128xf32>
    %c0_6 = arith.constant 0 : index
    %c0_7 = arith.constant 0 : index
    %8 = vector.load %arg9[%c0_6, %c0_7] : memref<8x256xf32, #tpu.memory_space<vmem>>, vector<8x128xf32>
    tpu.vector_store %arg9[%c0_6, %c0_7], %7 {strides = array<i32>} : memref<8x256xf32, #tpu.memory_space<vmem>>, vector<8x128xf32>,
    %c0_8 = arith.constant 0 : index
    %c0_9 = arith.constant 0 : index
    %9 = vector.load %arg9[%c0_8, %c0_9] : memref<8x256xf32, #tpu.memory_space<vmem>>, vector<8x256xf32>
    %cst = arith.constant dense<0.000000e+00> : vector<8x128xf32>
    %10 = tpu.matmul %9, %3, %cst {dimension_numbers = #tpu.dot_dimension_numbers<[1], [0], [0], [1], [0, 0, 1, 1], [], []>} : vector<8x256xf32>, vector<256x128xf32>, vector<8x128xf32> -> vector<8x128xf32>
    %11 = arith.addf %10, %6 : vector<8x128xf32>
    %12 = math.tanh %11 : vector<8x128xf32>
    %c0_10 = arith.constant 0 : index
    %c128 = arith.constant 128 : index
    %13 = vector.load %arg9[%c0_10, %c128] : memref<8x256xf32, #tpu.memory_space<vmem>>, vector<8x128xf32>
    tpu.vector_store %arg9[%c0_10, %c128], %12 {strides = array<i32>} : memref<8x256xf32, #tpu.memory_space<vmem>>, vector<8x128xf32>,
    %c0_11 = arith.constant 0 : index
    %c0_12 = arith.constant 0 : index
    %14 = vector.load %arg10[%c0_11, %c0_12] : memref<8x128xf32, #tpu.memory_space<vmem>>, vector<8x128xf32>
    tpu.vector_store %arg10[%c0_11, %c0_12], %12 {strides = array<i32>} : memref<8x128xf32, #tpu.memory_space<vmem>>, vector<8x128xf32>,
    %c0_13 = arith.constant 0 : index
    %c0_14 = arith.constant 0 : index
    %15 = vector.load %arg10[%c0_13, %c0_14] : memref<8x128xf32, #tpu.memory_space<vmem>>, vector<8x128xf32>
    %c0_15 = arith.constant 0 : index
    %c0_16 = arith.constant 0 : index
    %16 = vector.load %arg4[%c0_15, %c0_16] : memref<128x128xf32, #tpu.memory_space<vmem>>, vector<128x128xf32>
    %cst_17 = arith.constant dense<0.000000e+00> : vector<8x128xf32>
    %17 = tpu.matmul %15, %16, %cst_17 {dimension_numbers = #tpu.dot_dimension_numbers<[1], [0], [0], [1], [0, 0, 1, 1], [], []>} : vector<8x128xf32>, vector<128x128xf32>, vector<8x128xf32> -> vector<8x128xf32>
    %c0_18 = arith.constant 0 : index
    %c0_19 = arith.constant 0 : index
    %18 = vector.load %arg6[%c0_18, %c0_19] : memref<1x128xf32, #tpu.memory_space<vmem>>, vector<1x128xf32>
    %19 = vector.broadcast %18 : vector<1x128xf32> to vector<8x128xf32>
    %20 = arith.addf %17, %19 : vector<8x128xf32>
    %21 = math.tanh %20 : vector<8x128xf32>
    %c0_20 = arith.constant 0 : index
    %c0_21 = arith.constant 0 : index
    %22 = vector.load %arg7[%c0_20, %c0_21] : memref<8x128xf32, #tpu.memory_space<vmem>>, vector<8x128xf32>
    tpu.vector_store %arg7[%c0_20, %c0_21], %21 {strides = array<i32>} : memref<8x128xf32, #tpu.memory_space<vmem>>, vector<8x128xf32>,
    %c0_i32_22 = arith.constant 0 : i32
    %23 = arith.cmpi eq, %arg0, %c0_i32_22 : i32
    %24 = arith.extui %23 : i1 to i32
    %c0_i32_23 = arith.constant 0 : i32
    %25 = arith.cmpi ne, %24, %c0_i32_23 : i32
    scf.if %25 {
      %c0_24 = arith.constant 0 : index
      %c128_25 = arith.constant 128 : index
      %26 = vector.load %arg9[%c0_24, %c128_25] : memref<8x256xf32, #tpu.memory_space<vmem>>, vector<8x128xf32>
      %c0_26 = arith.constant 0 : index
      %c0_27 = arith.constant 0 : index
      %27 = vector.load %arg8[%c0_26, %c0_27] : memref<8x128xf32, #tpu.memory_space<vmem>>, vector<8x128xf32>
      tpu.vector_store %arg8[%c0_26, %c0_27], %26 {strides = array<i32>} : memref<8x128xf32, #tpu.memory_space<vmem>>, vector<8x128xf32>,
    } else {
    }
    return
  }
  func.func @transform_0(%arg0: i32) -> (i32, i32) {
    %c0_i32 = arith.constant 0 : i32
    %c0_i32_0 = arith.constant 0 : i32
    return %arg0, %c0_i32 : i32, i32
  }
  func.func @transform_1(%arg0: i32) -> (i32, i32) {
    %c0_i32 = arith.constant 0 : i32
    %c0_i32_0 = arith.constant 0 : i32
    %c0_i32_1 = arith.constant 0 : i32
    return %c0_i32, %c0_i32_0 : i32, i32
  }
  func.func @transform_2(%arg0: i32) -> (i32, i32) {
    %c0_i32 = arith.constant 0 : i32
    %c0_i32_0 = arith.constant 0 : i32
    %c0_i32_1 = arith.constant 0 : i32
    return %c0_i32, %c0_i32_0 : i32, i32
  }
  func.func @transform_3(%arg0: i32) -> (i32, i32) {
    %c0_i32 = arith.constant 0 : i32
    %c0_i32_0 = arith.constant 0 : i32
    %c0_i32_1 = arith.constant 0 : i32
    return %c0_i32, %c0_i32_0 : i32, i32
  }
  func.func @transform_4(%arg0: i32) -> (i32, i32) {
    %c0_i32 = arith.constant 0 : i32
    %c0_i32_0 = arith.constant 0 : i32
    %c0_i32_1 = arith.constant 0 : i32
    return %c0_i32, %c0_i32_0 : i32, i32
  }
  func.func @transform_5(%arg0: i32) -> (i32, i32) {
    %c0_i32 = arith.constant 0 : i32
    %c0_i32_0 = arith.constant 0 : i32
    %c0_i32_1 = arith.constant 0 : i32
    return %c0_i32, %c0_i32_0 : i32, i32
  }
  func.func @transform_6(%arg0: i32) -> (i32, i32) {
    %c0_i32 = arith.constant 0 : i32
    %c0_i32_0 = arith.constant 0 : i32
    return %arg0, %c0_i32 : i32, i32
  }
  func.func @transform_7(%arg0: i32) -> (i32, i32) {
    %c0_i32 = arith.constant 0 : i32
    %c0_i32_0 = arith.constant 0 : i32
    %c0_i32_1 = arith.constant 0 : i32
    return %c0_i32, %c0_i32_0 : i32, i32
  }
}

</mosaic_0001>

<llo_original>
// kernel: tpu_custom_call.1
$region0: #{tpu_custom_call.1}
  #allocation0 [shape = 'u32[]', space=smem, size = 0x4, offset = 0x4, fixed_abs, tag = 'smem constant byte address 0x4 - core index']
  #allocation1 [shape = 'u32[72,128]{1,0:T(1,128)}', space=vmem, size = 0x9000, scoped, tag = 'internal scratch']
  #allocation2 [shape = 'f32[8,256]{1,0:T(8,128)}', space=vmem, size = 0x2000, scoped, tag = 'scratch operand']
  #allocation3 [shape = 'f32[8,128]{1,0:T(8,128)}', space=vmem, size = 0x1000, scoped, tag = 'scratch operand']
  %s0 = inlined_call_operand.vmem [shape: f32[8,128], index: 0, kind: input, shape index: {}]
  %s1 = inlined_call_operand.hbm [shape: f32[8,128], index: 1, kind: input, shape index: {}, may-alias: {1,7}]
  %s2 = inlined_call_operand.hbm [shape: f32[256,128], index: 2, kind: input, shape index: {}]
  %s3 = inlined_call_operand.hbm [shape: f32[128,128], index: 3, kind: input, shape index: {}]
  %s4 = inlined_call_operand.vmem [shape: f32[1,128], index: 4, kind: input, shape index: {}]
  %s5 = inlined_call_operand.vmem [shape: f32[1,128], index: 5, kind: input, shape index: {}]
  %s6 = inlined_call_operand.hbm [shape: f32[8,128], index: 6, kind: output, shape index: {0}]
  %s7 = inlined_call_operand.hbm [shape: f32[8,128], index: 7, kind: output, shape index: {1}, may-alias: {1,7}]
  %8 = xla_tuple %s6, %s7
  %s9 = sld [smem:[#allocation0]]
  $region62: #{tpu_custom_call.1} parent=0
    _
  %s11 = ssub.s32 1, %s9
  %s12 = scalar_select 0, %s11, %s9
  $region1: #{tpu_custom_call.1} parent=0
    #allocation4 [shape = 'u8[4096]{0}', space=vmem, size = 0x1000, scoped, tag = 'input window, operand 1, single buffered']
    #allocation5 [shape = 's32[1]{0}', space=sflag, size = 0x4, scoped, tag = 'scoped memory for tpu_custom_call.1']
    #allocation6 [shape = 's32[1]{0}', space=sflag, size = 0x4, scoped, tag = 'scoped memory for tpu_custom_call.1']
    #allocation7 [shape = 'u8[131072]{0}', space=vmem, size = 0x20000, scoped, tag = 'input window, operand 2, single buffered']
    #allocation8 [shape = 's32[1]{0}', space=sflag, size = 0x4, scoped, tag = 'scoped memory for tpu_custom_call.1']
    #allocation9 [shape = 'u8[65536]{0}', space=vmem, size = 0x10000, scoped, tag = 'input window, operand 3, single buffered']
    #allocation10 [shape = 'u8[4096]{0}', space=vmem, size = 0x1000, scoped, tag = 'output window, operand 0, single buffered']
    #allocation11 [shape = 'u8[4096]{0}', space=vmem, size = 0x1000, scoped, tag = 'output window, operand 1, single buffered']
    #allocation12 [shape = 's32[1]{0}', space=sflag, size = 0x4, scoped, tag = 'scoped memory for tpu_custom_call.1']
    %13 = vsyncpa [#allocation5], 0
    %14 = vsyncpa [#allocation8], 0
    %15 = vsyncpa [#allocation6], 0
    %16 = vsyncpa [#allocation12], 0
    // Predicated region
    $region2: #{tpu_custom_call.1} parent=1 // pred_check
      _
    $region3: #{tpu_custom_call.1} parent=1 // pred_check_branch
      %18 = sbr.rel (0) target = $region5
    $region4: #{tpu_custom_call.1} parent=1 // pred_region
      _
    $region5: #{tpu_custom_call.1} parent=1 // pred_fallthru
      _
    // Predicated region
    $region6: #{tpu_custom_call.1} parent=1 // pred_check
      _
    $region7: #{tpu_custom_call.1} parent=1 // pred_check_branch
      %20 = sbr.rel (0) target = $region9
    $region8: #{tpu_custom_call.1} parent=1 // pred_region
      %22 = vsyncadd [#allocation5], 0
      %s24 = sshll.u32 %s1, 4
      %s25 = int_to_ptr.hbm [resolvable:$true] %s24
      %s26 = sshll.u32 [#allocation4], 4
      %s27 = int_to_ptr.vmem [resolvable:$true] %s26
      %29 = dma.hbm_to_vmem [thread:$0]  %s25, 128, %s27, [#allocation5]
    $region9: #{tpu_custom_call.1} parent=1 // pred_fallthru
      _
    // Predicated region
    $region10: #{tpu_custom_call.1} parent=1 // pred_check
      _
    $region11: #{tpu_custom_call.1} parent=1 // pred_check_branch
      %31 = sbr.rel (0) target = $region13
    $region12: #{tpu_custom_call.1} parent=1 // pred_region
      %33 = vsyncadd [#allocation8], 0
      %s34 = sshll.u32 %s2, 4
      %s35 = int_to_ptr.hbm [resolvable:$true] %s34
      %s36 = sshll.u32 [#allocation7], 4
      %s37 = int_to_ptr.vmem [resolvable:$true] %s36
      %42 = dma.hbm_to_vmem [thread:$0]  %s35, 4096, %s37, [#allocation8], 128, 128, 8
    $region13: #{tpu_custom_call.1} parent=1 // pred_fallthru
      _
    // Predicated region
    $region14: #{tpu_custom_call.1} parent=1 // pred_check
      _
    $region15: #{tpu_custom_call.1} parent=1 // pred_check_branch
      %44 = sbr.rel (0) target = $region17
    $region16: #{tpu_custom_call.1} parent=1 // pred_region
      %46 = vsyncadd [#allocation8], 0
      %s47 = sshll.u32 %s3, 4
      %s48 = int_to_ptr.hbm [resolvable:$true] %s47
      %s49 = sshll.u32 [#allocation9], 4
      %s50 = int_to_ptr.vmem [resolvable:$true] %s49
      %55 = dma.hbm_to_vmem [thread:$0]  %s48, 2048, %s50, [#allocation8], 128, 128, 8
    $region17: #{tpu_custom_call.1} parent=1 // pred_fallthru
      _
    // Predicated region
    $region18: #{tpu_custom_call.1} parent=1 // pred_check
      _
    $region19: #{tpu_custom_call.1} parent=1 // pred_check_branch
      %57 = sbr.rel (0) target = $region21
    $region20: #{tpu_custom_call.1} parent=1 // pred_region
      _
    $region21: #{tpu_custom_call.1} parent=1 // pred_fallthru
      _
    // Predicated region
    $region22: #{tpu_custom_call.1} parent=1 // pred_check
      _
    $region23: #{tpu_custom_call.1} parent=1 // pred_check_branch
      %59 = sbr.rel (0) target = $region25
    $region24: #{tpu_custom_call.1} parent=1 // pred_region
      _
    $region25: #{tpu_custom_call.1} parent=1 // pred_fallthru
      _
    // Predicated region
    $region26: #{tpu_custom_call.1} parent=1 // pred_check
      _
    $region27: #{tpu_custom_call.1} parent=1 // pred_check_branch
      %61 = sbr.rel (0) target = $region29
    $region28: #{tpu_custom_call.1} parent=1 // pred_region
      %63 = dma.done [#allocation5], 128
    $region29: #{tpu_custom_call.1} parent=1 // pred_fallthru
      _
    // Predicated region
    $region30: #{tpu_custom_call.1} parent=1 // pred_check
      _
    $region31: #{tpu_custom_call.1} parent=1 // pred_check_branch
      %65 = sbr.rel (0) target = $region33
    $region32: #{tpu_custom_call.1} parent=1 // pred_region
      %67 = dma.done [#allocation8], 4096
    $region33: #{tpu_custom_call.1} parent=1 // pred_fallthru
      _
    // Predicated region
    $region34: #{tpu_custom_call.1} parent=1 // pred_check
      _
    $region35: #{tpu_custom_call.1} parent=1 // pred_check_branch
      %69 = sbr.rel (0) target = $region37
    $region36: #{tpu_custom_call.1} parent=1 // pred_region
      %71 = dma.done [#allocation8], 2048
    $region37: #{tpu_custom_call.1} parent=1 // pred_fallthru
      _
    %p72 = scmp.eq.s32.totalorder 0, 0
    // Predicated region
    $region38: #{tpu_custom_call.1} parent=1 // pred_check
      %p73 = pneg %p72
    $region39: #{tpu_custom_call.1} parent=1 // pred_check_branch
      %75 = sbr.rel (%p73) target = $region41
    $region40: #{tpu_custom_call.1} parent=1 // pred_region
      %v76 = vld [vmem:[#allocation4] sm:$0xff]
      %77 = vst [vmem:[#allocation2 + $0x8] sm:$0xff] %v76
    $region41: #{tpu_custom_call.1} parent=1 // pred_fallthru
      _
    %v78 = vld [vmem:[#allocation7] sm:$0xff]
    %v79 = vld [vmem:[#allocation7 + $0x8] sm:$0xff]
    %v80 = vld [vmem:[#allocation7 + $0x10] sm:$0xff]
    %v81 = vld [vmem:[#allocation7 + $0x18] sm:$0xff]
    %v82 = vld [vmem:[#allocation7 + $0x20] sm:$0xff]
    %v83 = vld [vmem:[#allocation7 + $0x28] sm:$0xff]
    %v84 = vld [vmem:[#allocation7 + $0x30] sm:$0xff]
    %v85 = vld [vmem:[#allocation7 + $0x38] sm:$0xff]
    %v86 = vld [vmem:[#allocation7 + $0x40] sm:$0xff]
    %v87 = vld [vmem:[#allocation7 + $0x48] sm:$0xff]
    %v88 = vld [vmem:[#allocation7 + $0x50] sm:$0xff]
    %v89 = vld [vmem:[#allocation7 + $0x58] sm:$0xff]
    %v90 = vld [vmem:[#allocation7 + $0x60] sm:$0xff]
    %v91 = vld [vmem:[#allocation7 + $0x68] sm:$0xff]
    %v92 = vld [vmem:[#allocation7 + $0x70] sm:$0xff]
    %v93 = vld [vmem:[#allocation7 + $0x78] sm:$0xff]
    %v94 = vld [vmem:[#allocation7 + $0x80] sm:$0xff]
    %v95 = vld [vmem:[#allocation7 + $0x88] sm:$0xff]
    %v96 = vld [vmem:[#allocation7 + $0x90] sm:$0xff]
    %v97 = vld [vmem:[#allocation7 + $0x98] sm:$0xff]
    %v98 = vld [vmem:[#allocation7 + $0xa0] sm:$0xff]
    %v99 = vld [vmem:[#allocation7 + $0xa8] sm:$0xff]
    %v100 = vld [vmem:[#allocation7 + $0xb0] sm:$0xff]
    %v101 = vld [vmem:[#allocation7 + $0xb8] sm:$0xff]
    %v102 = vld [vmem:[#allocation7 + $0xc0] sm:$0xff]
    %v103 = vld [vmem:[#allocation7 + $0xc8] sm:$0xff]
    %v104 = vld [vmem:[#allocation7 + $0xd0] sm:$0xff]
    %v105 = vld [vmem:[#allocation7 + $0xd8] sm:$0xff]
    %v106 = vld [vmem:[#allocation7 + $0xe0] sm:$0xff]
    %v107 = vld [vmem:[#allocation7 + $0xe8] sm:$0xff]
    %v108 = vld [vmem:[#allocation7 + $0xf0] sm:$0xff]
    %v109 = vld [vmem:[#allocation7 + $0xf8] sm:$0xff]
    %v110 = vld [vmem:[%s4] sm:$0x1]
    %v112 = vperm.slane %v110, 0
    %v114 = vld [vmem:[%s0] sm:$0xff]
    %115 = vst [vmem:[#allocation2] sm:$0xff] %v114
    %v116 = vld [vmem:[#allocation2] sm:$0xff]
    %v117 = vld [vmem:[#allocation2 + $0x8] sm:$0xff]
    %118 = vmatpush.msra.mxu0 %v93
    %119 = vmatpush.msra.mxu0 %v92
    %120 = vmatpush.msra.mxu0 %v91
    %121 = vmatpush.msra.mxu0 %v90
    %122 = vmatpush.msra.mxu0 %v89
    %123 = vmatpush.msra.mxu0 %v88
    %124 = vmatpush.msra.mxu0 %v87
    %125 = vmatpush.msra.mxu0 %v86
    %126 = vmatpush.msra.mxu0 %v85
    %127 = vmatpush.msra.mxu0 %v84
    %128 = vmatpush.msra.mxu0 %v83
    %129 = vmatpush.msra.mxu0 %v82
    %130 = vmatpush.msra.mxu0 %v81
    %131 = vmatpush.msra.mxu0 %v80
    %132 = vmatpush.msra.mxu0 %v79
    %133 = vmatpush.msra.mxu0 %v78
    %134 = vmatmul.f32.gmra.mxu0 %v116
    %v135 = vpop.f32.mrf.mxu0
    %v136 = vadd.f32 %v112, %v135
    %137 = vdwg.mxu0
    %138 = vmatpush.msra.mxu0 %v109
    %139 = vmatpush.msra.mxu0 %v108
    %140 = vmatpush.msra.mxu0 %v107
    %141 = vmatpush.msra.mxu0 %v106
    %142 = vmatpush.msra.mxu0 %v105
    %143 = vmatpush.msra.mxu0 %v104
    %144 = vmatpush.msra.mxu0 %v103
    %145 = vmatpush.msra.mxu0 %v102
    %146 = vmatpush.msra.mxu0 %v101
    %147 = vmatpush.msra.mxu0 %v100
    %148 = vmatpush.msra.mxu0 %v99
    %149 = vmatpush.msra.mxu0 %v98
    %150 = vmatpush.msra.mxu0 %v97
    %151 = vmatpush.msra.mxu0 %v96
    %152 = vmatpush.msra.mxu0 %v95
    %153 = vmatpush.msra.mxu0 %v94
    %154 = vmatmul.f32.gmra.mxu0 %v117
    %v155 = vpop.f32.mrf.mxu0
    %v156 = vadd.f32 %v136, %v155
    %157 = vdwg.mxu0
    %v158 = vtanh.pop %v156
    %159 = vst [vmem:[#allocation2 + $0x8] sm:$0xff] %v158
    %160 = vst [vmem:[#allocation3] sm:$0xff] %v158
    %v161 = vld [vmem:[#allocation3] sm:$0xff]
    %v162 = vld [vmem:[#allocation9] sm:$0xff]
    %v163 = vld [vmem:[#allocation9 + $0x8] sm:$0xff]
    %v164 = vld [vmem:[#allocation9 + $0x10] sm:$0xff]
    %v165 = vld [vmem:[#allocation9 + $0x18] sm:$0xff]
    %v166 = vld [vmem:[#allocation9 + $0x20] sm:$0xff]
    %v167 = vld [vmem:[#allocation9 + $0x28] sm:$0xff]
    %v168 = vld [vmem:[#allocation9 + $0x30] sm:$0xff]
    %v169 = vld [vmem:[#allocation9 + $0x38] sm:$0xff]
    %v170 = vld [vmem:[#allocation9 + $0x40] sm:$0xff]
    %v171 = vld [vmem:[#allocation9 + $0x48] sm:$0xff]
    %v172 = vld [vmem:[#allocation9 + $0x50] sm:$0xff]
    %v173 = vld [vmem:[#allocation9 + $0x58] sm:$0xff]
    %v174 = vld [vmem:[#allocation9 + $0x60] sm:$0xff]
    %v175 = vld [vmem:[#allocation9 + $0x68] sm:$0xff]
    %v176 = vld [vmem:[#allocation9 + $0x70] sm:$0xff]
    %v177 = vld [vmem:[#allocation9 + $0x78] sm:$0xff]
    %v178 = vld [vmem:[%s5] sm:$0x1]
    %v180 = vperm.slane %v178, 0
    %182 = vmatpush.msra.mxu0 %v177
    %183 = vmatpush.msra.mxu0 %v176
    %184 = vmatpush.msra.mxu0 %v175
    %185 = vmatpush.msra.mxu0 %v174
    %186 = vmatpush.msra.mxu0 %v173
    %187 = vmatpush.msra.mxu0 %v172
    %188 = vmatpush.msra.mxu0 %v171
    %189 = vmatpush.msra.mxu0 %v170
    %190 = vmatpush.msra.mxu0 %v169
    %191 = vmatpush.msra.mxu0 %v168
    %192 = vmatpush.msra.mxu0 %v167
    %193 = vmatpush.msra.mxu0 %v166
    %194 = vmatpush.msra.mxu0 %v165
    %195 = vmatpush.msra.mxu0 %v164
    %196 = vmatpush.msra.mxu0 %v163
    %197 = vmatpush.msra.mxu0 %v162
    %198 = vmatmul.f32.gmra.mxu0 %v161
    %v199 = vpop.f32.mrf.mxu0
    %v200 = vadd.f32 %v180, %v199
    %201 = vdwg.mxu0
    %v202 = vtanh.pop %v200
    %203 = vst [vmem:[#allocation10] sm:$0xff] %v202
    // Predicated region
    $region42: #{tpu_custom_call.1} parent=1 // pred_check
      %p204 = pneg %p72
    $region43: #{tpu_custom_call.1} parent=1 // pred_check_branch
      %206 = sbr.rel (%p204) target = $region45
    $region44: #{tpu_custom_call.1} parent=1 // pred_region
      %v207 = vld [vmem:[#allocation2 + $0x8] sm:$0xff]
      %208 = vst [vmem:[#allocation11] sm:$0xff] %v207
    $region45: #{tpu_custom_call.1} parent=1 // pred_fallthru
      _
    // Predicated region
    $region46: #{tpu_custom_call.1} parent=1 // pred_check
      _
    $region47: #{tpu_custom_call.1} parent=1 // pred_check_branch
      %210 = sbr.rel (0) target = $region49
    $region48: #{tpu_custom_call.1} parent=1 // pred_region
      %212 = vsyncadd [#allocation6], 0
      %s214 = sshll.u32 [#allocation10], 4
      %s215 = int_to_ptr.vmem [resolvable:$true] %s214
      %s216 = sshll.u32 %s6, 4
      %s217 = int_to_ptr.hbm [resolvable:$true] %s216
      %219 = dma.vmem_to_hbm [thread:$0]  %s215, 128, %s217, [#allocation6]
    $region49: #{tpu_custom_call.1} parent=1 // pred_fallthru
      _
    // Predicated region
    $region50: #{tpu_custom_call.1} parent=1 // pred_check
      _
    $region51: #{tpu_custom_call.1} parent=1 // pred_check_branch
      %221 = sbr.rel (0) target = $region53
    $region52: #{tpu_custom_call.1} parent=1 // pred_region
      %223 = vsyncadd [#allocation12], 0
      %s225 = sshll.u32 [#allocation11], 4
      %s226 = int_to_ptr.vmem [resolvable:$true] %s225
      %s227 = sshll.u32 %s7, 4
      %s228 = int_to_ptr.hbm [resolvable:$true] %s227
      %230 = dma.vmem_to_hbm [thread:$0]  %s226, 128, %s228, [#allocation12]
    $region53: #{tpu_custom_call.1} parent=1 // pred_fallthru
      _
    // Predicated region
    $region54: #{tpu_custom_call.1} parent=1 // pred_check
      _
    $region55: #{tpu_custom_call.1} parent=1 // pred_check_branch
      %232 = sbr.rel (0) target = $region57
    $region56: #{tpu_custom_call.1} parent=1 // pred_region
      %234 = dma.done [#allocation6], 128
    $region57: #{tpu_custom_call.1} parent=1 // pred_fallthru
      _
    // Predicated region
    $region58: #{tpu_custom_call.1} parent=1 // pred_check
      _
    $region59: #{tpu_custom_call.1} parent=1 // pred_check_branch
      %236 = sbr.rel (0) target = $region61
    $region60: #{tpu_custom_call.1} parent=1 // pred_region
      %238 = dma.done [#allocation12], 128
    $region61: #{tpu_custom_call.1} parent=1 // pred_fallthru
      _
    %239 = vsyncpa [#allocation5], 1
    %240 = vsyncpa [#allocation8], 1
    %241 = vsyncpa [#allocation6], 1
    %242 = vsyncpa [#allocation12], 1

</llo_original>
